<compile_context>
chip_gen: v7x
topology: tpu7x:2x2x1
jax: 0.10.0
libtpu: 0.0.40
codegen_flags: <defaults>
</compile_context>

<pallas_src>
import functools

import jax
import jax.numpy as jnp
from jax.experimental import pallas as pl
from jax.experimental.pallas import tpu as pltpu

BN_EPS = 1e-5


def _round_up(n, m):
    return ((n + m - 1) // m) * m


def _simplenn_kernel(x_ref, wp_ref, bp_ref, o_ref, *, dims):
    """Fused MLP forward on one (tb, input_size) batch tile."""
    in_f, hid, h2, h4, out_f, r_in, r_1, r_2, r_o = dims

    x = x_ref[...]
    wp = wp_ref[...]
    bp = bp_ref[...]

    # Static slices of the packed parameter blocks (zero runtime cost).
    w_in = wp[r_in:r_in + in_f, :hid]
    w1 = wp[r_1:r_1 + hid, :h2]
    w2 = wp[r_2:r_2 + h2, :h4]      # BN1 already folded in
    w_o = wp[r_o:r_o + h4, :out_f]  # BN2 already folded in

    b_in = bp[0:1, :hid]
    b1 = bp[1:2, :h2]
    b2 = bp[2:3, :h4]
    b_o = bp[3:4, :out_f]

    # input_layer + ReLU
    h = jnp.maximum(jnp.dot(x, w_in, preferred_element_type=jnp.float32) + b_in, 0.0)
    # layer1 + ReLU (batchnorm1 folded into layer2's weights/bias)
    h = jnp.maximum(jnp.dot(h, w1, preferred_element_type=jnp.float32) + b1, 0.0)
    # layer2 + ReLU (batchnorm2 folded into output_layer; dropout = identity in eval)
    h = jnp.maximum(jnp.dot(h, w2, preferred_element_type=jnp.float32) + b2, 0.0)
    # output_layer + sigmoid
    logits = jnp.dot(h, w_o, preferred_element_type=jnp.float32) + b_o
    o_ref[...] = jax.nn.sigmoid(logits)


def fold_and_pack_params(params):
    """Fold eval-mode BatchNorm into adjacent Linear layers and pack all
    weights/biases into two arrays (one DMA each)."""
    w_in, b_in = params["w_in"], params["b_in"]
    w1, b1 = params["w1"], params["b1"]
    w2, b2 = params["w2"], params["b2"]
    w_out, b_out = params["w_out"], params["b_out"]

    # y = (h - m) * rsqrt(v + eps) * g + beta  ==  h * scale + shift
    scale1 = params["g1"] * jax.lax.rsqrt(params["v1"] + BN_EPS)   # (1, h2)
    shift1 = params["be1"] - params["m1"] * scale1
    scale2 = params["g2"] * jax.lax.rsqrt(params["v2"] + BN_EPS)   # (1, h4)
    shift2 = params["be2"] - params["m2"] * scale2

    # (h*scale + shift) @ W + b == h @ (scale.T * W) + (shift @ W + b)
    w2f = w2 * scale1.T
    b2f = b2 + shift1 @ w2
    w_outf = w_out * scale2.T
    b_outf = b_out + shift2 @ w_out

    in_f, hid = w_in.shape
    h2 = w1.shape[1]
    h4 = w2f.shape[1]
    out_f = w_outf.shape[1]

    width = max(hid, h2, h4, out_f)
    r_in = 0
    r_1 = r_in + _round_up(in_f, 8)
    r_2 = r_1 + _round_up(hid, 8)
    r_o = r_2 + _round_up(h2, 8)
    rows = r_o + _round_up(h4, 8)

    wp = jnp.zeros((rows, width), jnp.float32)
    wp = wp.at[r_in:r_in + in_f, :hid].set(w_in)
    wp = wp.at[r_1:r_1 + hid, :h2].set(w1)
    wp = wp.at[r_2:r_2 + h2, :h4].set(w2f)
    wp = wp.at[r_o:r_o + h4, :out_f].set(w_outf)

    bp = jnp.zeros((4, width), jnp.float32)
    bp = bp.at[0, :hid].set(b_in[0])
    bp = bp.at[1, :h2].set(b1[0])
    bp = bp.at[2, :h4].set(b2f[0])
    bp = bp.at[3, :out_f].set(b_outf[0])

    dims = (in_f, hid, h2, h4, out_f, r_in, r_1, r_2, r_o)
    return wp, bp, dims


def simplenn_forward(x, params, *, block_rows=512):
    """x: (B, input_size) float32. params: dict of weights (see init_params)."""
    x = x.astype(jnp.float32)
    batch, in_f = x.shape

    wp, bp, dims = fold_and_pack_params(params)
    out_f = dims[4]

    # Batch tile: multiple of 8, capped at the (rounded-up) batch size.
    tb = min(_round_up(block_rows, 8), _round_up(batch, 8))
    padded_b = _round_up(batch, tb)
    if padded_b != batch:
        x = jnp.pad(x, ((0, padded_b - batch), (0, 0)))
    grid = (padded_b // tb,)

    kernel = functools.partial(_simplenn_kernel, dims=dims)

    out = pl.pallas_call(
        kernel,
        out_shape=jax.ShapeDtypeStruct((padded_b, out_f), jnp.float32),
        grid_spec=pltpu.PrefetchScalarGridSpec(
            num_scalar_prefetch=0,
            grid=grid,
            in_specs=[
                pl.BlockSpec((tb, in_f), lambda i: (i, 0)),   # x: tiled over batch
                pl.BlockSpec(wp.shape, lambda i: (0, 0)),     # weight pack: resident
                pl.BlockSpec(bp.shape, lambda i: (0, 0)),     # bias pack: resident
            ],
            out_specs=pl.BlockSpec((tb, out_f), lambda i: (i, 0)),
        ),
        compiler_params=pltpu.CompilerParams(
            dimension_semantics=("parallel",)),
    )(x, wp, bp)

    return out[:batch]


def init_params(key, input_size, hidden_size, output_size):
    """Deterministic synthetic parameters matching SimpleNN's layer shapes.
    BatchNorm running stats / affine params are randomized (non-trivial) so the
    BN-folding path is actually exercised by the correctness check."""
    h2 = hidden_size // 2
    h4 = hidden_size // 4
    keys = jax.random.split(key, 6)

    def lin(k, fan_in, fan_out):
        kw, kb = jax.random.split(k)
        scale = 1.0 / jnp.sqrt(jnp.float32(fan_in))
        # PyTorch nn.Linear stores weight as (out, in); we store (in, out) = W.T
        w = jax.random.uniform(kw, (fan_in, fan_out), jnp.float32, -scale, scale)
        b = jax.random.uniform(kb, (1, fan_out), jnp.float32, -scale, scale)
        return w, b

    def bn(k, n):
        kg, kb, km, kv = jax.random.split(k, 4)
        return (
            jax.random.uniform(kg, (1, n), jnp.float32, 0.5, 1.5),     # gamma
            0.1 * jax.random.normal(kb, (1, n), jnp.float32),          # beta
            0.1 * jax.random.normal(km, (1, n), jnp.float32),          # running mean
            jax.random.uniform(kv, (1, n), jnp.float32, 0.5, 1.5),     # running var
        )

    w_in, b_in = lin(keys[0], input_size, hidden_size)
    w1, b1 = lin(keys[1], hidden_size, h2)
    w2, b2 = lin(keys[2], h2, h4)
    w_out, b_out = lin(keys[3], h4, output_size)
    g1, be1, m1, v1 = bn(keys[4], h2)
    g2, be2, m2, v2 = bn(keys[5], h4)

    return dict(
        w_in=w_in, b_in=b_in,
        w1=w1, b1=b1,
        g1=g1, be1=be1, m1=m1, v1=v1,
        w2=w2, b2=b2,
        g2=g2, be2=be2, m2=m2, v2=v2,
        w_out=w_out, b_out=b_out,
    )


def reference_forward(x, params):
    """Pure-JAX reference (explicit eval-mode BN, no folding)."""
    h = jnp.maximum(x @ params["w_in"] + params["b_in"], 0.0)
    h = jnp.maximum(h @ params["w1"] + params["b1"], 0.0)
    h = (h - params["m1"]) / jnp.sqrt(params["v1"] + BN_EPS) * params["g1"] + params["be1"]
    h = jnp.maximum(h @ params["w2"] + params["b2"], 0.0)
    h = (h - params["m2"]) / jnp.sqrt(params["v2"] + BN_EPS) * params["g2"] + params["be2"]
    return jax.nn.sigmoid(h @ params["w_out"] + params["b_out"])


if __name__ == "__main__":
    input_size, hidden_size, output_size = 8, 32, 1  # Titanic-style feature count

    key = jax.random.PRNGKey(0)
    k_x, k_x2, k_p = jax.random.split(key, 3)
    params = init_params(k_p, input_size, hidden_size, output_size)

    # Small batch: single grid step.
    x = jax.random.normal(k_x, (8, input_size), jnp.float32)
    out = jax.block_until_ready(simplenn_forward(x, params))
    ref = reference_forward(x, params)
    assert out.shape == (8, output_size)
    assert jnp.allclose(out, ref, atol=1e-5, rtol=1e-5), "mismatch vs reference (small batch)"

    # Larger, non-tile-multiple batch: exercises the batch grid + padding path.
    x2 = jax.random.normal(k_x2, (200, input_size), jnp.float32)
    out2 = jax.block_until_ready(simplenn_forward(x2, params, block_rows=64))
    ref2 = reference_forward(x2, params)
    assert out2.shape == (200, output_size)
    assert jnp.allclose(out2, ref2, atol=1e-5, rtol=1e-5), "mismatch vs reference (gridded batch)"

    print("KERNEL_OK")
</pallas_src>

<mosaic_0001>
module attributes {stable_mosaic.version = 11 : i64} {
  func.func @_simplenn_kernel(%arg0: i32, %arg1: memref<8x8xf32, #tpu.memory_space<vmem>>, %arg2: memref<64x32xf32, #tpu.memory_space<vmem>>, %arg3: memref<4x32xf32, #tpu.memory_space<vmem>>, %arg4: memref<8x1xf32, #tpu.memory_space<vmem>>) attributes {dimension_semantics = [#tpu.dimension_semantics<parallel>], iteration_bounds = array<i64: 1>, scalar_prefetch = 0 : i64, scratch_operands = 0 : i64, tpu.core_type = #tpu.core_type<tc>, window_params = [{transform_indices = @transform_0, window_bounds = array<i64: 8, 8>}, {pipeline_mode = #tpu.pipeline_mode<synchronous>, transform_indices = @transform_1, window_bounds = array<i64: 64, 32>}, {pipeline_mode = #tpu.pipeline_mode<synchronous>, transform_indices = @transform_2, window_bounds = array<i64: 4, 32>}, {transform_indices = @transform_3, window_bounds = array<i64: 8, 1>}]} {
    %c0 = arith.constant 0 : index
    %c0_0 = arith.constant 0 : index
    %0 = vector.load %arg1[%c0, %c0_0] : memref<8x8xf32, #tpu.memory_space<vmem>>, vector<8x8xf32>
    %c0_1 = arith.constant 0 : index
    %c0_2 = arith.constant 0 : index
    %1 = vector.load %arg2[%c0_1, %c0_2] : memref<64x32xf32, #tpu.memory_space<vmem>>, vector<64x32xf32>
    %c0_3 = arith.constant 0 : index
    %c0_4 = arith.constant 0 : index
    %2 = vector.load %arg3[%c0_3, %c0_4] : memref<4x32xf32, #tpu.memory_space<vmem>>, vector<4x32xf32>
    %3 = vector.extract_strided_slice %1 {offsets = [0, 0], sizes = [8, 32], strides = [1, 1]} : vector<64x32xf32> to vector<8x32xf32>
    %4 = vector.extract_strided_slice %1 {offsets = [8, 0], sizes = [32, 16], strides = [1, 1]} : vector<64x32xf32> to vector<32x16xf32>
    %5 = vector.extract_strided_slice %1 {offsets = [40, 0], sizes = [16, 8], strides = [1, 1]} : vector<64x32xf32> to vector<16x8xf32>
    %6 = vector.extract_strided_slice %1 {offsets = [56, 0], sizes = [8, 1], strides = [1, 1]} : vector<64x32xf32> to vector<8x1xf32>
    %7 = vector.extract_strided_slice %2 {offsets = [0, 0], sizes = [1, 32], strides = [1, 1]} : vector<4x32xf32> to vector<1x32xf32>
    %8 = vector.extract_strided_slice %2 {offsets = [1, 0], sizes = [1, 16], strides = [1, 1]} : vector<4x32xf32> to vector<1x16xf32>
    %9 = vector.extract_strided_slice %2 {offsets = [2, 0], sizes = [1, 8], strides = [1, 1]} : vector<4x32xf32> to vector<1x8xf32>
    %10 = vector.extract_strided_slice %2 {offsets = [3, 0], sizes = [1, 1], strides = [1, 1]} : vector<4x32xf32> to vector<1x1xf32>
    %cst = arith.constant dense<0.000000e+00> : vector<8x32xf32>
    %11 = tpu.matmul %0, %3, %cst {dimension_numbers = #tpu.dot_dimension_numbers<[1], [0], [0], [1], [0, 0, 1, 1], [], []>} : vector<8x8xf32>, vector<8x32xf32>, vector<8x32xf32> -> vector<8x32xf32>
    %12 = vector.broadcast %7 : vector<1x32xf32> to vector<8x32xf32>
    %13 = arith.addf %11, %12 : vector<8x32xf32>
    %cst_5 = arith.constant 0.000000e+00 : f32
    %14 = vector.broadcast %cst_5 : f32 to vector<8x32xf32>
    %15 = arith.maximumf %13, %14 : vector<8x32xf32>
    %cst_6 = arith.constant dense<0.000000e+00> : vector<8x16xf32>
    %16 = tpu.matmul %15, %4, %cst_6 {dimension_numbers = #tpu.dot_dimension_numbers<[1], [0], [0], [1], [0, 0, 1, 1], [], []>} : vector<8x32xf32>, vector<32x16xf32>, vector<8x16xf32> -> vector<8x16xf32>
    %17 = vector.broadcast %8 : vector<1x16xf32> to vector<8x16xf32>
    %18 = arith.addf %16, %17 : vector<8x16xf32>
    %cst_7 = arith.constant 0.000000e+00 : f32
    %19 = vector.broadcast %cst_7 : f32 to vector<8x16xf32>
    %20 = arith.maximumf %18, %19 : vector<8x16xf32>
    %cst_8 = arith.constant dense<0.000000e+00> : vector<8x8xf32>
    %21 = tpu.matmul %20, %5, %cst_8 {dimension_numbers = #tpu.dot_dimension_numbers<[1], [0], [0], [1], [0, 0, 1, 1], [], []>} : vector<8x16xf32>, vector<16x8xf32>, vector<8x8xf32> -> vector<8x8xf32>
    %22 = vector.broadcast %9 : vector<1x8xf32> to vector<8x8xf32>
    %23 = arith.addf %21, %22 : vector<8x8xf32>
    %cst_9 = arith.constant 0.000000e+00 : f32
    %24 = vector.broadcast %cst_9 : f32 to vector<8x8xf32>
    %25 = arith.maximumf %23, %24 : vector<8x8xf32>
    %cst_10 = arith.constant dense<0.000000e+00> : vector<8x1xf32>
    %26 = tpu.matmul %25, %6, %cst_10 {dimension_numbers = #tpu.dot_dimension_numbers<[1], [0], [0], [1], [0, 0, 1, 1], [], []>} : vector<8x8xf32>, vector<8x1xf32>, vector<8x1xf32> -> vector<8x1xf32>
    %27 = vector.broadcast %10 : vector<1x1xf32> to vector<8x1xf32>
    %28 = arith.addf %26, %27 : vector<8x1xf32>
    %29 = arith.negf %28 : vector<8x1xf32>
    %30 = math.exp %29 : vector<8x1xf32>
    %cst_11 = arith.constant 1.000000e+00 : f32
    %31 = vector.broadcast %cst_11 : f32 to vector<8x1xf32>
    %32 = arith.addf %31, %30 : vector<8x1xf32>
    %33 = arith.divf %31, %32 : vector<8x1xf32>
    %c0_12 = arith.constant 0 : index
    %c0_13 = arith.constant 0 : index
    %34 = vector.load %arg4[%c0_12, %c0_13] : memref<8x1xf32, #tpu.memory_space<vmem>>, vector<8x1xf32>
    tpu.vector_store %arg4[%c0_12, %c0_13], %33 {strides = array<i32>} : memref<8x1xf32, #tpu.memory_space<vmem>>, vector<8x1xf32>,
    return
  }
  func.func @transform_0(%arg0: i32) -> (i32, i32) {
    %c0_i32 = arith.constant 0 : i32
    %c0_i32_0 = arith.constant 0 : i32
    return %arg0, %c0_i32 : i32, i32
  }
  func.func @transform_1(%arg0: i32) -> (i32, i32) {
    %c0_i32 = arith.constant 0 : i32
    %c0_i32_0 = arith.constant 0 : i32
    %c0_i32_1 = arith.constant 0 : i32
    return %c0_i32, %c0_i32_0 : i32, i32
  }
  func.func @transform_2(%arg0: i32) -> (i32, i32) {
    %c0_i32 = arith.constant 0 : i32
    %c0_i32_0 = arith.constant 0 : i32
    %c0_i32_1 = arith.constant 0 : i32
    return %c0_i32, %c0_i32_0 : i32, i32
  }
  func.func @transform_3(%arg0: i32) -> (i32, i32) {
    %c0_i32 = arith.constant 0 : i32
    %c0_i32_0 = arith.constant 0 : i32
    return %arg0, %c0_i32 : i32, i32
  }
}

</mosaic_0001>

<llo_original>
// kernel: tpu_custom_call.1
$region0: #{tpu_custom_call.1}
  #allocation0 [shape = 'u32[]', space=smem, size = 0x4, offset = 0x4, fixed_abs, tag = 'smem constant byte address 0x4 - core index']
  #allocation1 [shape = 'u32[144,128]{1,0:T(1,128)}', space=vmem, size = 0x12000, scoped, tag = 'internal scratch']
  %s0 = inlined_call_operand.vmem [shape: f32[8,8], index: 0, kind: input, shape index: {}]
  %s1 = inlined_call_operand.vmem [shape: f32[64,32], index: 1, kind: input, shape index: {}]
  %s2 = inlined_call_operand.vmem [shape: f32[4,32], index: 2, kind: input, shape index: {}]
  %s3 = inlined_call_operand.vmem [shape: f32[8,1], index: 3, kind: output, shape index: {}]
  %s4 = sld [smem:[#allocation0]]
  $region22: #{tpu_custom_call.1} parent=0
    _
  %s6 = ssub.s32 1, %s4
  %s7 = scalar_select 0, %s6, %s4
  // Predicated region
  $region2: #{tpu_custom_call.1} parent=0 // pred_check
    _
  $region3: #{tpu_custom_call.1} parent=0 // pred_check_branch
    %9 = sbr.rel (0) target = $region5
  $region4: #{tpu_custom_call.1} parent=0 // pred_region
    _
  $region5: #{tpu_custom_call.1} parent=0 // pred_fallthru
    _
  // Predicated region
  $region6: #{tpu_custom_call.1} parent=0 // pred_check
    _
  $region7: #{tpu_custom_call.1} parent=0 // pred_check_branch
    %11 = sbr.rel (0) target = $region9
  $region8: #{tpu_custom_call.1} parent=0 // pred_region
    _
  $region9: #{tpu_custom_call.1} parent=0 // pred_fallthru
    _
  // Predicated region
  $region10: #{tpu_custom_call.1} parent=0 // pred_check
    _
  $region11: #{tpu_custom_call.1} parent=0 // pred_check_branch
    %13 = sbr.rel (0) target = $region13
  $region12: #{tpu_custom_call.1} parent=0 // pred_region
    _
  $region13: #{tpu_custom_call.1} parent=0 // pred_fallthru
    _
  %v14 = vld [vmem:[%s0] sm:$0xff]
  %v15 = vld [vmem:[%s1] sm:$0xff]
  %v16 = vld [vmem:[%s1 + $0x8] sm:$0xff]
  %v17 = vld [vmem:[%s1 + $0x10] sm:$0xff]
  %v18 = vld [vmem:[%s1 + $0x18] sm:$0xff]
  %v19 = vld [vmem:[%s1 + $0x20] sm:$0xff]
  %v20 = vld [vmem:[%s1 + $0x28] sm:$0xff]
  %v21 = vld [vmem:[%s1 + $0x30] sm:$0xff]
  %v22 = vld [vmem:[%s1 + $0x38] sm:$0xff]
  %v23 = vld [vmem:[%s2] sm:$0xf]
  %v24 = vlaneseq
  %v25 = vshrl.u32 %v24, 7
  %v26 = vsub.s32 0, %v25
  %v27 = vrot.slane %v23, %v26
  %vm28 = vcmask 64512
  %v30 = vsel %vm28, %v14, 0
  %32 = vmatprep.subr.mxu0 0.0
  %33 = vmatpush1.msra.mxu0 %v15
  %34 = vmatprep.subr.mxu0 0.0
  %35 = vmatpush1.msra.mxu0 0.0
  %36 = vmatprep.subr.mxu0 0.0
  %37 = vmatpush1.msra.mxu0 0.0
  %38 = vmatprep.subr.mxu0 0.0
  %39 = vmatpush1.msra.mxu0 0.0
  %40 = vmatprep.subr.mxu0 0.0
  %41 = vmatpush1.msra.mxu0 0.0
  %42 = vmatprep.subr.mxu0 0.0
  %43 = vmatpush1.msra.mxu0 0.0
  %44 = vmatprep.subr.mxu0 0.0
  %45 = vmatpush1.msra.mxu0 0.0
  %46 = vmatprep.subr.mxu0 0.0
  %47 = vmatpush1.msra.mxu0 0.0
  %48 = vmatprep.subr.mxu0 0.0
  %49 = vmatpush1.msra.mxu0 0.0
  %50 = vmatprep.subr.mxu0 0.0
  %51 = vmatpush1.msra.mxu0 0.0
  %52 = vmatprep.subr.mxu0 0.0
  %53 = vmatpush1.msra.mxu0 0.0
  %54 = vmatprep.subr.mxu0 0.0
  %55 = vmatpush1.msra.mxu0 0.0
  %56 = vmatprep.subr.mxu0 0.0
  %57 = vmatpush1.msra.mxu0 0.0
  %58 = vmatprep.subr.mxu0 0.0
  %59 = vmatpush1.msra.mxu0 0.0
  %60 = vmatprep.subr.mxu0 0.0
  %61 = vmatpush1.msra.mxu0 0.0
  %62 = vmatprep.subr.mxu0 0.0
  %63 = vmatpush1.msra.mxu0 0.0
  %64 = vmatprep.subr.mxu0 0.0
  %65 = vmatpush1.msra.mxu0 0.0
  %66 = vmatprep.subr.mxu0 0.0
  %67 = vmatpush1.msra.mxu0 0.0
  %68 = vmatprep.subr.mxu0 0.0
  %69 = vmatpush1.msra.mxu0 0.0
  %70 = vmatprep.subr.mxu0 0.0
  %71 = vmatpush1.msra.mxu0 0.0
  %72 = vmatprep.subr.mxu0 0.0
  %73 = vmatpush1.msra.mxu0 0.0
  %74 = vmatprep.subr.mxu0 0.0
  %75 = vmatpush1.msra.mxu0 0.0
  %76 = vmatprep.subr.mxu0 0.0
  %77 = vmatpush1.msra.mxu0 0.0
  %78 = vmatprep.subr.mxu0 0.0
  %79 = vmatpush1.msra.mxu0 0.0
  %80 = vmatprep.subr.mxu0 0.0
  %81 = vmatpush1.msra.mxu0 0.0
  %82 = vmatprep.subr.mxu0 0.0
  %83 = vmatpush1.msra.mxu0 0.0
  %84 = vmatprep.subr.mxu0 0.0
  %85 = vmatpush1.msra.mxu0 0.0
  %86 = vmatprep.subr.mxu0 0.0
  %87 = vmatpush1.msra.mxu0 0.0
  %88 = vmatprep.subr.mxu0 0.0
  %89 = vmatpush1.msra.mxu0 0.0
  %90 = vmatprep.subr.mxu0 0.0
  %91 = vmatpush1.msra.mxu0 0.0
  %92 = vmatprep.subr.mxu0 0.0
  %93 = vmatpush1.msra.mxu0 0.0
  %94 = vmatprep.subr.mxu0 0.0
  %95 = vmatpush1.msra.mxu0 0.0
  %96 = vmatprep.mubr.f32.mxu0 0.0
  %97 = vmatmul.mubr.f32.gmra.mrb[0].mxu0 %v30
  %v98 = vpop.f32.mrb[0].mxu0
  %v99 = vadd.f32 %v27, %v98
  %v100 = vpop.f32.mrb[0].mxu0
  %101 = vdwg.mxu0
  %v102 = vmax.f32 %v99, 0.0
  %v103 = vlaneseq
  %v104 = vshrl.u32 %v103, 7
  %v105 = vsub.s32 1, %v104
  %v106 = vrot.slane %v23, %v105
  %vm107 = vcmask 261120
  %v109 = vsel %vm107, %v102, 0
  %111 = vmatprep.subr.mxu0 0.0
  %112 = vmatpush1.msra.mxu0 %v16
  %113 = vmatprep.subr.mxu0 0.0
  %114 = vmatpush1.msra.mxu0 %v17
  %115 = vmatprep.subr.mxu0 0.0
  %116 = vmatpush1.msra.mxu0 %v18
  %117 = vmatprep.subr.mxu0 0.0
  %118 = vmatpush1.msra.mxu0 %v19
  %119 = vmatprep.subr.mxu0 0.0
  %120 = vmatpush1.msra.mxu0 0.0
  %121 = vmatprep.subr.mxu0 0.0
  %122 = vmatpush1.msra.mxu0 0.0
  %123 = vmatprep.subr.mxu0 0.0
  %124 = vmatpush1.msra.mxu0 0.0
  %125 = vmatprep.subr.mxu0 0.0
  %126 = vmatpush1.msra.mxu0 0.0
  %127 = vmatprep.subr.mxu0 0.0
  %128 = vmatpush1.msra.mxu0 0.0
  %129 = vmatprep.subr.mxu0 0.0
  %130 = vmatpush1.msra.mxu0 0.0
  %131 = vmatprep.subr.mxu0 0.0
  %132 = vmatpush1.msra.mxu0 0.0
  %133 = vmatprep.subr.mxu0 0.0
  %134 = vmatpush1.msra.mxu0 0.0
  %135 = vmatprep.subr.mxu0 0.0
  %136 = vmatpush1.msra.mxu0 0.0
  %137 = vmatprep.subr.mxu0 0.0
  %138 = vmatpush1.msra.mxu0 0.0
  %139 = vmatprep.subr.mxu0 0.0
  %140 = vmatpush1.msra.mxu0 0.0
  %141 = vmatprep.subr.mxu0 0.0
  %142 = vmatpush1.msra.mxu0 0.0
  %143 = vmatprep.subr.mxu0 0.0
  %144 = vmatpush1.msra.mxu0 0.0
  %145 = vmatprep.subr.mxu0 0.0
  %146 = vmatpush1.msra.mxu0 0.0
  %147 = vmatprep.subr.mxu0 0.0
  %148 = vmatpush1.msra.mxu0 0.0
  %149 = vmatprep.subr.mxu0 0.0
  %150 = vmatpush1.msra.mxu0 0.0
  %151 = vmatprep.subr.mxu0 0.0
  %152 = vmatpush1.msra.mxu0 0.0
  %153 = vmatprep.subr.mxu0 0.0
  %154 = vmatpush1.msra.mxu0 0.0
  %155 = vmatprep.subr.mxu0 0.0
  %156 = vmatpush1.msra.mxu0 0.0
  %157 = vmatprep.subr.mxu0 0.0
  %158 = vmatpush1.msra.mxu0 0.0
  %159 = vmatprep.subr.mxu0 0.0
  %160 = vmatpush1.msra.mxu0 0.0
  %161 = vmatprep.subr.mxu0 0.0
  %162 = vmatpush1.msra.mxu0 0.0
  %163 = vmatprep.subr.mxu0 0.0
  %164 = vmatpush1.msra.mxu0 0.0
  %165 = vmatprep.subr.mxu0 0.0
  %166 = vmatpush1.msra.mxu0 0.0
  %167 = vmatprep.subr.mxu0 0.0
  %168 = vmatpush1.msra.mxu0 0.0
  %169 = vmatprep.subr.mxu0 0.0
  %170 = vmatpush1.msra.mxu0 0.0
  %171 = vmatprep.subr.mxu0 0.0
  %172 = vmatpush1.msra.mxu0 0.0
  %173 = vmatprep.subr.mxu0 0.0
  %174 = vmatpush1.msra.mxu0 0.0
  %175 = vmatprep.mubr.f32.mxu0 0.0
  %176 = vmatmul.mubr.f32.gmra.mrb[0].mxu0 %v109
  %v177 = vpop.f32.mrb[0].mxu0
  %v178 = vadd.f32 %v106, %v177
  %v179 = vpop.f32.mrb[0].mxu0
  %180 = vdwg.mxu0
  %v181 = vmax.f32 %v178, 0.0
  %v182 = vlaneseq
  %v183 = vshrl.u32 %v182, 7
  %v184 = vsub.s32 2, %v183
  %v185 = vrot.slane %v23, %v184
  %vm186 = vcmask 130048
  %v188 = vsel %vm186, %v181, 0
  %190 = vmatprep.subr.mxu0 0.0
  %191 = vmatpush1.msra.mxu0 %v20
  %192 = vmatprep.subr.mxu0 0.0
  %193 = vmatpush1.msra.mxu0 %v21
  %194 = vmatprep.subr.mxu0 0.0
  %195 = vmatpush1.msra.mxu0 0.0
  %196 = vmatprep.subr.mxu0 0.0
  %197 = vmatpush1.msra.mxu0 0.0
  %198 = vmatprep.subr.mxu0 0.0
  %199 = vmatpush1.msra.mxu0 0.0
  %200 = vmatprep.subr.mxu0 0.0
  %201 = vmatpush1.msra.mxu0 0.0
  %202 = vmatprep.subr.mxu0 0.0
  %203 = vmatpush1.msra.mxu0 0.0
  %204 = vmatprep.subr.mxu0 0.0
  %205 = vmatpush1.msra.mxu0 0.0
  %206 = vmatprep.subr.mxu0 0.0
  %207 = vmatpush1.msra.mxu0 0.0
  %208 = vmatprep.subr.mxu0 0.0
  %209 = vmatpush1.msra.mxu0 0.0
  %210 = vmatprep.subr.mxu0 0.0
  %211 = vmatpush1.msra.mxu0 0.0
  %212 = vmatprep.subr.mxu0 0.0
  %213 = vmatpush1.msra.mxu0 0.0
  %214 = vmatprep.subr.mxu0 0.0
  %215 = vmatpush1.msra.mxu0 0.0
  %216 = vmatprep.subr.mxu0 0.0
  %217 = vmatpush1.msra.mxu0 0.0
  %218 = vmatprep.subr.mxu0 0.0
  %219 = vmatpush1.msra.mxu0 0.0
  %220 = vmatprep.subr.mxu0 0.0
  %221 = vmatpush1.msra.mxu0 0.0
  %222 = vmatprep.subr.mxu0 0.0
  %223 = vmatpush1.msra.mxu0 0.0
  %224 = vmatprep.subr.mxu0 0.0
  %225 = vmatpush1.msra.mxu0 0.0
  %226 = vmatprep.subr.mxu0 0.0
  %227 = vmatpush1.msra.mxu0 0.0
  %228 = vmatprep.subr.mxu0 0.0
  %229 = vmatpush1.msra.mxu0 0.0
  %230 = vmatprep.subr.mxu0 0.0
  %231 = vmatpush1.msra.mxu0 0.0
  %232 = vmatprep.subr.mxu0 0.0
  %233 = vmatpush1.msra.mxu0 0.0
  %234 = vmatprep.subr.mxu0 0.0
  %235 = vmatpush1.msra.mxu0 0.0
  %236 = vmatprep.subr.mxu0 0.0
  %237 = vmatpush1.msra.mxu0 0.0
  %238 = vmatprep.subr.mxu0 0.0
  %239 = vmatpush1.msra.mxu0 0.0
  %240 = vmatprep.subr.mxu0 0.0
  %241 = vmatpush1.msra.mxu0 0.0
  %242 = vmatprep.subr.mxu0 0.0
  %243 = vmatpush1.msra.mxu0 0.0
  %244 = vmatprep.subr.mxu0 0.0
  %245 = vmatpush1.msra.mxu0 0.0
  %246 = vmatprep.subr.mxu0 0.0
  %247 = vmatpush1.msra.mxu0 0.0
  %248 = vmatprep.subr.mxu0 0.0
  %249 = vmatpush1.msra.mxu0 0.0
  %250 = vmatprep.subr.mxu0 0.0
  %251 = vmatpush1.msra.mxu0 0.0
  %252 = vmatprep.subr.mxu0 0.0
  %253 = vmatpush1.msra.mxu0 0.0
  %254 = vmatprep.mubr.f32.mxu0 0.0
  %255 = vmatmul.mubr.f32.gmra.mrb[0].mxu0 %v188
  %v256 = vpop.f32.mrb[0].mxu0
  %v257 = vadd.f32 %v185, %v256
  %v258 = vpop.f32.mrb[0].mxu0
  %259 = vdwg.mxu0
  %v260 = vmax.f32 %v257, 0.0
  %v261 = vlaneseq
  %v262 = vshrl.u32 %v261, 7
  %v263 = vsub.s32 3, %v262
  %v264 = vrot.slane %v23, %v263
  %v266 = vsel %vm28, %v260, 0
  %268 = vmatprep.subr.mxu0 0.0
  %269 = vmatpush1.msra.mxu0 %v22
  %270 = vmatprep.subr.mxu0 0.0
  %271 = vmatpush1.msra.mxu0 0.0
  %272 = vmatprep.subr.mxu0 0.0
  %273 = vmatpush1.msra.mxu0 0.0
  %274 = vmatprep.subr.mxu0 0.0
  %275 = vmatpush1.msra.mxu0 0.0
  %276 = vmatprep.subr.mxu0 0.0
  %277 = vmatpush1.msra.mxu0 0.0
  %278 = vmatprep.subr.mxu0 0.0
  %279 = vmatpush1.msra.mxu0 0.0
  %280 = vmatprep.subr.mxu0 0.0
  %281 = vmatpush1.msra.mxu0 0.0
  %282 = vmatprep.subr.mxu0 0.0
  %283 = vmatpush1.msra.mxu0 0.0
  %284 = vmatprep.subr.mxu0 0.0
  %285 = vmatpush1.msra.mxu0 0.0
  %286 = vmatprep.subr.mxu0 0.0
  %287 = vmatpush1.msra.mxu0 0.0
  %288 = vmatprep.subr.mxu0 0.0
  %289 = vmatpush1.msra.mxu0 0.0
  %290 = vmatprep.subr.mxu0 0.0
  %291 = vmatpush1.msra.mxu0 0.0
  %292 = vmatprep.subr.mxu0 0.0
  %293 = vmatpush1.msra.mxu0 0.0
  %294 = vmatprep.subr.mxu0 0.0
  %295 = vmatpush1.msra.mxu0 0.0
  %296 = vmatprep.subr.mxu0 0.0
  %297 = vmatpush1.msra.mxu0 0.0
  %298 = vmatprep.subr.mxu0 0.0
  %299 = vmatpush1.msra.mxu0 0.0
  %300 = vmatprep.subr.mxu0 0.0
  %301 = vmatpush1.msra.mxu0 0.0
  %302 = vmatprep.subr.mxu0 0.0
  %303 = vmatpush1.msra.mxu0 0.0
  %304 = vmatprep.subr.mxu0 0.0
  %305 = vmatpush1.msra.mxu0 0.0
  %306 = vmatprep.subr.mxu0 0.0
  %307 = vmatpush1.msra.mxu0 0.0
  %308 = vmatprep.subr.mxu0 0.0
  %309 = vmatpush1.msra.mxu0 0.0
  %310 = vmatprep.subr.mxu0 0.0
  %311 = vmatpush1.msra.mxu0 0.0
  %312 = vmatprep.subr.mxu0 0.0
  %313 = vmatpush1.msra.mxu0 0.0
  %314 = vmatprep.subr.mxu0 0.0
  %315 = vmatpush1.msra.mxu0 0.0
  %316 = vmatprep.subr.mxu0 0.0
  %317 = vmatpush1.msra.mxu0 0.0
  %318 = vmatprep.subr.mxu0 0.0
  %319 = vmatpush1.msra.mxu0 0.0
  %320 = vmatprep.subr.mxu0 0.0
  %321 = vmatpush1.msra.mxu0 0.0
  %322 = vmatprep.subr.mxu0 0.0
  %323 = vmatpush1.msra.mxu0 0.0
  %324 = vmatprep.subr.mxu0 0.0
  %325 = vmatpush1.msra.mxu0 0.0
  %326 = vmatprep.subr.mxu0 0.0
  %327 = vmatpush1.msra.mxu0 0.0
  %328 = vmatprep.subr.mxu0 0.0
  %329 = vmatpush1.msra.mxu0 0.0
  %330 = vmatprep.subr.mxu0 0.0
  %331 = vmatpush1.msra.mxu0 0.0
  %332 = vmatprep.mubr.f32.mxu0 0.0
  %333 = vmatmul.mubr.f32.gmra.mrb[0].mxu0 %v266
  %v334 = vpop.f32.mrb[0].mxu0
  %v335 = vadd.f32 %v264, %v334
  %v336 = vpop.f32.mrb[0].mxu0
  %337 = vdwg.mxu0
  %v338 = vxor.u32 %v335, 2147483648
  %v339 = vmul.f32 %v338, 1.442695
  %v340 = vpow.pop %v339
  %v341 = vadd.f32 %v340, 1.0
  %v342 = vrcp.pop %v341
  %v343 = vmul.f32 1.0, %v342
  %vm344 = vcmask 7168
  %345 = vst.msk [vmem:[%s3] sm:$0xff] %vm344, %v343
  // Predicated region
  $region14: #{tpu_custom_call.1} parent=0 // pred_check
    _
  $region15: #{tpu_custom_call.1} parent=0 // pred_check_branch
    %347 = sbr.rel (0) target = $region17
  $region16: #{tpu_custom_call.1} parent=0 // pred_region
    _
  $region17: #{tpu_custom_call.1} parent=0 // pred_fallthru
    _
  // Predicated region
  $region18: #{tpu_custom_call.1} parent=0 // pred_check
    _
  $region19: #{tpu_custom_call.1} parent=0 // pred_check_branch
    %349 = sbr.rel (0) target = $region21
  $region20: #{tpu_custom_call.1} parent=0 // pred_region
    _
  $region21: #{tpu_custom_call.1} parent=0 // pred_fallthru
    _

</llo_original>
